<compile_context>
chip_gen: v7x
topology: tpu7x:2x2x1
jax: 0.10.0
libtpu: 0.0.40
codegen_flags: <defaults>
</compile_context>

<pallas_src>
import jax
import jax.numpy as jnp
import numpy as np
from jax.experimental import pallas as pl
from jax.experimental.pallas import tpu as pltpu

NEG_INF = -1e30  # Python float: never a captured traced constant


def pooled_embed_kernel(packed_ref, sparams_ref, wnum_ref, bnum_ref, tab_ref, out_ref):
    fn = sparams_ref.shape[1]                            # number of numerical features

    # ---- unpack the single per-row input tile --------------------------------
    packed = packed_ref[...]                             # (TR, Fn+1) f32
    x = packed[:, :fn]                                   # (TR, Fn) numerical scalars
    ids = pltpu.bitcast(packed[:, fn:fn + 1], jnp.int32)  # (TR, 1) categorical ids

    # ---- numerical features: scores directly from the raw scalars ------------
    valid = jnp.logical_not(jnp.isnan(x))                # pre-mask (post-mask is constant
    x0 = jnp.where(valid, x, 0.0)                        #  True for finite parameters)

    s_w = sparams_ref[0:1, :]                            # (1, Fn) = w_num @ wa^T
    s_b = sparams_ref[1:2, :]                            # (1, Fn) = b_num @ wa^T + ba
    scores_num = x0 * s_w + s_b                          # (TR, Fn) 2-D elementwise
    scores_num = jnp.where(valid, scores_num, NEG_INF)

    # ---- categorical feature: one bf16 one-hot matmul -> embedding + score ---
    tr = x.shape[0]
    v = tab_ref.shape[0]
    d = tab_ref.shape[1] - 1                             # last column = precomputed score
    iota_v = jax.lax.broadcasted_iota(jnp.int32, (tr, v), 1)
    # NOTE(v5e): bool->bf16 cast of a (TR, V) tensor is extra VALU filler on v5e (no bf16
    # VALU); pass table_compute_dtype=jnp.float32 there if it ever shows up in profiles.
    onehot = (ids == iota_v).astype(tab_ref.dtype)       # (TR, V)
    emb_aug = jnp.dot(onehot, tab_ref[...],
                      preferred_element_type=jnp.float32)  # (TR, d+1) f32
    xE_cat = emb_aug[:, :d]                              # (TR, d)
    scores_cat = emb_aug[:, d:]                          # (TR, 1) (int ids are never NaN)

    # ---- masked softmax over the feature axis (Fn numerical + 1 categorical) -
    m = jnp.maximum(jnp.max(scores_num, axis=-1, keepdims=True), scores_cat)
    e_num = jnp.exp(scores_num - m)                      # masked -> exp(-1e30 - m) == 0
    e_cat = jnp.exp(scores_cat - m)
    inv = pl.reciprocal(jnp.sum(e_num, axis=-1, keepdims=True) + e_cat, approx=True)
    attn_num = e_num * inv                               # (TR, Fn)
    attn_cat = e_cat * inv                               # (TR, 1)

    # ---- pooled output: two small MXU dots + one broadcast-multiply ----------
    # sum_k attn_k * (x0_k * w_k + b_k)  ==  (attn*x0) @ W  +  attn @ B
    pooled = (jnp.dot(attn_num * x0, wnum_ref[...], preferred_element_type=jnp.float32)
              + jnp.dot(attn_num, bnum_ref[...], preferred_element_type=jnp.float32)
              + attn_cat * xE_cat)                       # (TR, d)
    out_ref[...] = pooled.astype(out_ref.dtype)


def _round_up(a, m):
    return (a + m - 1) // m * m


def pooled_embedding_forward(x_num, cat_ids, w_num, b_num, table, wa, ba, *,
                             tile_rows=512, table_compute_dtype=jnp.bfloat16,
                             out_dtype=jnp.float32):
    """x_num: (R, Fn) f32, cat_ids: (R, 1) int32, w_num/b_num: (Fn, d),
    table: (V, d), wa: (1, d), ba: (1, 1).  Returns (R, d) out_dtype."""
    R, Fn = x_num.shape
    V, d = table.shape

    # ---- one-time host-side precompute (folds wa/ba out of the kernel) -------
    s_w = w_num @ wa[0]                                  # (Fn,)
    s_b = b_num @ wa[0] + ba[0, 0]                       # (Fn,)
    sparams = jnp.stack([s_w, s_b], axis=0).astype(jnp.float32)         # (2, Fn)
    s_tab = table @ wa[0] + ba[0, 0]                     # (V,) per-vocab-row score
    table_aug = jnp.concatenate([table, s_tab[:, None]], axis=1)        # (V, d+1)
    table_aug = table_aug.astype(table_compute_dtype)

    # ---- pack numerical values + bitcast ids into one per-row input ----------
    ids_bits = jax.lax.bitcast_convert_type(cat_ids.astype(jnp.int32), jnp.float32)
    packed = jnp.concatenate([x_num.astype(jnp.float32), ids_bits], axis=1)  # (R, Fn+1)

    # ---- tile size: large tiles amortize the ~0.35us/step pipeline overhead, -
    # but keep >= 2 tiles whenever R allows so both v7x TensorCores get work. --
    cap = pl.cdiv(R, 2) if R >= 16 else R
    tr = max(8, _round_up(min(int(tile_rows), int(cap)), 8))
    n_tiles = pl.cdiv(R, tr)                             # ragged last tile handled by Pallas

    # ---- VMEM budget: tiles + resident operands + in-kernel intermediates ----
    tab_item = jnp.dtype(table_compute_dtype).itemsize
    out_item = jnp.dtype(out_dtype).itemsize
    est_bytes = (
        2 * tr * (Fn + 1) * 4                            # packed input, double-buffered
        + 2 * tr * d * out_item                          # output tile, double-buffered
        + 2 * (V * (d + 1) * tab_item                    # resident table (+score column)
               + 2 * Fn * 4 + 2 * Fn * d * 4)            # sparams, w_num, b_num
        + tr * V * (4 + tab_item)                        # in-kernel iota + one-hot
        + tr * (d + 1) * 4                               # emb_aug
        + 6 * tr * Fn * 4                                # scores / exp / attn temporaries
        + 2 * tr * d * 4                                 # pooled + partial sums
    )
    try:
        vmem_cap = int(pltpu.get_tpu_info().vmem_capacity_bytes)
    except Exception:                                    # conservative floor (v7x per-TC)
        vmem_cap = 64 * 1024 * 1024
    vmem_limit = int(min(max(est_bytes * 5 // 4 + (1 << 20), 16 << 20),
                         vmem_cap * 9 // 10))

    return pl.pallas_call(
        pooled_embed_kernel,
        out_shape=jax.ShapeDtypeStruct((R, d), out_dtype),
        grid_spec=pltpu.PrefetchScalarGridSpec(
            num_scalar_prefetch=0,
            grid=(n_tiles,),
            in_specs=[
                pl.BlockSpec((tr, Fn + 1), lambda i: (i, 0)),       # packed row tile
                # loop-invariant operands: constant index_map -> copied once, stays
                # resident in VMEM (pipeliner elides repeat copies of the same block).
                pl.BlockSpec(sparams.shape, lambda i: (0, 0)),      # (2, Fn) score params
                pl.BlockSpec(w_num.shape, lambda i: (0, 0)),        # (Fn, d) weights
                pl.BlockSpec(b_num.shape, lambda i: (0, 0)),        # (Fn, d) biases
                pl.BlockSpec(table_aug.shape, lambda i: (0, 0)),    # (V, d+1) table+score
            ],
            out_specs=pl.BlockSpec((tr, d), lambda i: (i, 0)),
        ),
        compiler_params=pltpu.CompilerParams(
            dimension_semantics=("parallel",),
            vmem_limit_bytes=vmem_limit),
    )(packed, sparams, w_num, b_num, table_aug)


# ------------------------- pure-JAX reference ---------------------------------
def reference_forward(num_a, num_b, cat_c, w_num, b_num, table, wa, ba):
    def embed_numerical(x, w, b):          # x: (B, N, 1)
        pre = ~jnp.isnan(x[..., 0:1])
        x0 = jnp.nan_to_num(x, nan=0.0)
        xE = x0 * w[None, None, :] + b[None, None, :]                 # (B, N, d)
        post = ~jnp.all(jnp.isnan(xE), axis=-1, keepdims=True)
        mask = pre & post
        return jnp.nan_to_num(xE, nan=0.0), mask

    xa, ma = embed_numerical(num_a, w_num[0], b_num[0])
    xb, mb = embed_numerical(num_b, w_num[1], b_num[1])

    xc = table[cat_c]                                                 # (B, N, d)
    pre_c = jnp.ones(cat_c.shape + (1,), dtype=bool)                  # isnan(int) == False
    post_c = ~jnp.all(jnp.isnan(xc), axis=-1, keepdims=True)
    mc = pre_c & post_c
    xc = jnp.nan_to_num(xc, nan=0.0)

    res_full = jnp.stack([xa, xb, xc], axis=-2)                       # (B, N, F, d)
    mask_full = jnp.stack([ma[..., 0], mb[..., 0], mc[..., 0]], axis=-1)  # (B, N, F)

    scores = jnp.sum(res_full * wa[0][None, None, None, :], axis=-1) + ba[0, 0]
    scores = jnp.where(mask_full, scores, NEG_INF)
    attn = jax.nn.softmax(scores, axis=-1)
    return jnp.sum(res_full * attn[..., None], axis=-2)               # (B, N, d)


if __name__ == "__main__":
    B, N, d_model = 2, 8, 32
    V = 16            # categorical vocab size, padding_idx = 0
    Fn = 2            # two numerical features, dim = 1 each
    R = B * N

    key = jax.random.PRNGKey(0)
    k1, k2, k3, k4, k5, k6, k7 = jax.random.split(key, 7)

    # deterministic parameters (nn.Linear(1, d) / nn.Embedding(V, d) / attn Linear(d, 1))
    w_num = jax.random.normal(k1, (Fn, d_model), jnp.float32) * 0.1
    b_num = jax.random.normal(k2, (Fn, d_model), jnp.float32) * 0.1
    table = jax.random.normal(k3, (V, d_model), jnp.float32) * 0.1
    table = table.at[0].set(0.0)                      # padding_idx row zeroed
    wa = jax.random.normal(k4, (1, d_model), jnp.float32) * 0.1
    ba = jnp.zeros((1, 1), jnp.float32)

    # inputs: numerical (B, N, 1) with a few NaNs, categorical (B, N) int ids
    num_a = jax.random.normal(k5, (B, N, 1), jnp.float32)
    num_a = num_a.at[0, 2, 0].set(jnp.nan).at[1, 5, 0].set(jnp.nan)
    num_b = jax.random.normal(k6, (B, N, 1), jnp.float32)
    num_b = num_b.at[1, 0, 0].set(jnp.nan)
    cat_c = jax.random.randint(k7, (B, N), 0, V).astype(jnp.int32)
    cat_c = cat_c.at[0, 0].set(0)                     # hit the padding id as well

    # glue: pack features into the kernel layout (ModuleDict insertion order)
    x_num = jnp.concatenate([num_a.reshape(R, 1), num_b.reshape(R, 1)], axis=1)  # (R, Fn)
    cat_ids = cat_c.reshape(R, 1)                                                # (R, 1)

    out_flat = pooled_embedding_forward(x_num, cat_ids, w_num, b_num, table, wa, ba)
    out = jax.block_until_ready(out_flat.reshape(B, N, d_model))

    ref = reference_forward(num_a, num_b, cat_c, w_num, b_num, table, wa, ba)
    # tolerance covers bf16 table rounding + approx reciprocal
    np.testing.assert_allclose(np.asarray(out), np.asarray(ref), rtol=3e-3, atol=3e-3)

    print("KERNEL_OK")
</pallas_src>

<mosaic_0001>
module attributes {stable_mosaic.version = 11 : i64} {
  func.func @pooled_embed_kernel(%arg0: i32, %arg1: memref<8x3xf32, #tpu.memory_space<vmem>>, %arg2: memref<2x2xf32, #tpu.memory_space<vmem>>, %arg3: memref<2x32xf32, #tpu.memory_space<vmem>>, %arg4: memref<2x32xf32, #tpu.memory_space<vmem>>, %arg5: memref<16x33xbf16, #tpu.memory_space<vmem>>, %arg6: memref<8x32xf32, #tpu.memory_space<vmem>>) attributes {dimension_semantics = [#tpu.dimension_semantics<parallel>], iteration_bounds = array<i64: 2>, scalar_prefetch = 0 : i64, scratch_operands = 0 : i64, tpu.core_type = #tpu.core_type<tc>, window_params = [{transform_indices = @transform_0, window_bounds = array<i64: 8, 3>}, {pipeline_mode = #tpu.pipeline_mode<synchronous>, transform_indices = @transform_1, window_bounds = array<i64: 2, 2>}, {pipeline_mode = #tpu.pipeline_mode<synchronous>, transform_indices = @transform_2, window_bounds = array<i64: 2, 32>}, {pipeline_mode = #tpu.pipeline_mode<synchronous>, transform_indices = @transform_3, window_bounds = array<i64: 2, 32>}, {pipeline_mode = #tpu.pipeline_mode<synchronous>, transform_indices = @transform_4, window_bounds = array<i64: 16, 33>}, {transform_indices = @transform_5, window_bounds = array<i64: 8, 32>}]} {
    %c0 = arith.constant 0 : index
    %c0_0 = arith.constant 0 : index
    %0 = vector.load %arg1[%c0, %c0_0] : memref<8x3xf32, #tpu.memory_space<vmem>>, vector<8x3xf32>
    %1 = vector.extract_strided_slice %0 {offsets = [0, 0], sizes = [8, 2], strides = [1, 1]} : vector<8x3xf32> to vector<8x2xf32>
    %2 = vector.extract_strided_slice %0 {offsets = [0, 2], sizes = [8, 1], strides = [1, 1]} : vector<8x3xf32> to vector<8x1xf32>
    %3 = tpu.bitcast %2 : vector<8x1xf32> -> vector<8x1xi32>
    %4 = arith.cmpf one, %1, %1 : vector<8x2xf32>
    %cst = arith.constant dense<true> : vector<8x2xi1>
    %5 = arith.xori %4, %cst : vector<8x2xi1>
    %cst_1 = arith.constant 0.000000e+00 : f32
    %6 = vector.broadcast %cst_1 : f32 to vector<8x2xf32>
    %7 = arith.select %5, %1, %6 : vector<8x2xi1>, vector<8x2xf32>
    %c0_2 = arith.constant 0 : index
    %c0_3 = arith.constant 0 : index
    %8 = vector.load %arg2[%c0_2, %c0_3] : memref<2x2xf32, #tpu.memory_space<vmem>>, vector<1x2xf32>
    %c1 = arith.constant 1 : index
    %c0_4 = arith.constant 0 : index
    %9 = vector.load %arg2[%c1, %c0_4] : memref<2x2xf32, #tpu.memory_space<vmem>>, vector<1x2xf32>
    %10 = vector.broadcast %8 : vector<1x2xf32> to vector<8x2xf32>
    %11 = arith.mulf %7, %10 : vector<8x2xf32>
    %12 = vector.broadcast %9 : vector<1x2xf32> to vector<8x2xf32>
    %13 = arith.addf %11, %12 : vector<8x2xf32>
    %cst_5 = arith.constant -1.000000e+30 : f32
    %14 = vector.broadcast %cst_5 : f32 to vector<8x2xf32>
    %15 = arith.select %5, %13, %14 : vector<8x2xi1>, vector<8x2xf32>
    %16 = tpu.iota {dimensions = array<i32: 1>} : vector<8x16xi32>
    %17 = vector.broadcast %3 : vector<8x1xi32> to vector<8x16xi32>
    %18 = arith.cmpi eq, %17, %16 : vector<8x16xi32>
    %19 = arith.extui %18 : vector<8x16xi1> to vector<8x16xi32>
    %20 = arith.sitofp %19 : vector<8x16xi32> to vector<8x16xf32>
    %21 = arith.truncf %20 : vector<8x16xf32> to vector<8x16xbf16>
    %c0_6 = arith.constant 0 : index
    %c0_7 = arith.constant 0 : index
    %22 = vector.load %arg5[%c0_6, %c0_7] : memref<16x33xbf16, #tpu.memory_space<vmem>>, vector<16x33xbf16>
    %cst_8 = arith.constant dense<0.000000e+00> : vector<8x33xf32>
    %23 = tpu.matmul %21, %22, %cst_8 {dimension_numbers = #tpu.dot_dimension_numbers<[1], [0], [0], [1], [0, 0, 1, 1], [], []>} : vector<8x16xbf16>, vector<16x33xbf16>, vector<8x33xf32> -> vector<8x33xf32>
    %24 = vector.extract_strided_slice %23 {offsets = [0, 0], sizes = [8, 32], strides = [1, 1]} : vector<8x33xf32> to vector<8x32xf32>
    %25 = vector.extract_strided_slice %23 {offsets = [0, 32], sizes = [8, 1], strides = [1, 1]} : vector<8x33xf32> to vector<8x1xf32>
    %cst_9 = arith.constant dense<0xFF800000> : vector<8xf32>
    %26 = vector.multi_reduction <maximumf>, %15, %cst_9 [1] : vector<8x2xf32> to vector<8xf32>
    %27 = vector.shape_cast %26 : vector<8xf32> to vector<8x1xf32>
    %28 = arith.maximumf %27, %25 : vector<8x1xf32>
    %29 = vector.broadcast %28 : vector<8x1xf32> to vector<8x2xf32>
    %30 = arith.subf %15, %29 : vector<8x2xf32>
    %31 = math.exp %30 : vector<8x2xf32>
    %32 = arith.subf %25, %28 : vector<8x1xf32>
    %33 = math.exp %32 : vector<8x1xf32>
    %cst_10 = arith.constant dense<0.000000e+00> : vector<8xf32>
    %34 = vector.multi_reduction <add>, %31, %cst_10 [1] : vector<8x2xf32> to vector<8xf32>
    %35 = vector.shape_cast %34 : vector<8xf32> to vector<8x1xf32>
    %36 = arith.addf %35, %33 : vector<8x1xf32>
    %37 = tpu.reciprocal %36 {approx = true} : vector<8x1xf32> -> vector<8x1xf32>
    %38 = vector.broadcast %37 : vector<8x1xf32> to vector<8x2xf32>
    %39 = arith.mulf %31, %38 : vector<8x2xf32>
    %40 = arith.mulf %33, %37 : vector<8x1xf32>
    %41 = arith.mulf %39, %7 : vector<8x2xf32>
    %c0_11 = arith.constant 0 : index
    %c0_12 = arith.constant 0 : index
    %42 = vector.load %arg3[%c0_11, %c0_12] : memref<2x32xf32, #tpu.memory_space<vmem>>, vector<2x32xf32>
    %cst_13 = arith.constant dense<0.000000e+00> : vector<8x32xf32>
    %43 = tpu.matmul %41, %42, %cst_13 {dimension_numbers = #tpu.dot_dimension_numbers<[1], [0], [0], [1], [0, 0, 1, 1], [], []>} : vector<8x2xf32>, vector<2x32xf32>, vector<8x32xf32> -> vector<8x32xf32>
    %c0_14 = arith.constant 0 : index
    %c0_15 = arith.constant 0 : index
    %44 = vector.load %arg4[%c0_14, %c0_15] : memref<2x32xf32, #tpu.memory_space<vmem>>, vector<2x32xf32>
    %cst_16 = arith.constant dense<0.000000e+00> : vector<8x32xf32>
    %45 = tpu.matmul %39, %44, %cst_16 {dimension_numbers = #tpu.dot_dimension_numbers<[1], [0], [0], [1], [0, 0, 1, 1], [], []>} : vector<8x2xf32>, vector<2x32xf32>, vector<8x32xf32> -> vector<8x32xf32>
    %46 = arith.addf %43, %45 : vector<8x32xf32>
    %47 = vector.broadcast %40 : vector<8x1xf32> to vector<8x32xf32>
    %48 = arith.mulf %47, %24 : vector<8x32xf32>
    %49 = arith.addf %46, %48 : vector<8x32xf32>
    %c0_17 = arith.constant 0 : index
    %c0_18 = arith.constant 0 : index
    %50 = vector.load %arg6[%c0_17, %c0_18] : memref<8x32xf32, #tpu.memory_space<vmem>>, vector<8x32xf32>
    tpu.vector_store %arg6[%c0_17, %c0_18], %49 {strides = array<i32>} : memref<8x32xf32, #tpu.memory_space<vmem>>, vector<8x32xf32>,
    return
  }
  func.func @transform_0(%arg0: i32) -> (i32, i32) {
    %c0_i32 = arith.constant 0 : i32
    %c0_i32_0 = arith.constant 0 : i32
    return %arg0, %c0_i32 : i32, i32
  }
  func.func @transform_1(%arg0: i32) -> (i32, i32) {
    %c0_i32 = arith.constant 0 : i32
    %c0_i32_0 = arith.constant 0 : i32
    %c0_i32_1 = arith.constant 0 : i32
    return %c0_i32, %c0_i32_0 : i32, i32
  }
  func.func @transform_2(%arg0: i32) -> (i32, i32) {
    %c0_i32 = arith.constant 0 : i32
    %c0_i32_0 = arith.constant 0 : i32
    %c0_i32_1 = arith.constant 0 : i32
    return %c0_i32, %c0_i32_0 : i32, i32
  }
  func.func @transform_3(%arg0: i32) -> (i32, i32) {
    %c0_i32 = arith.constant 0 : i32
    %c0_i32_0 = arith.constant 0 : i32
    %c0_i32_1 = arith.constant 0 : i32
    return %c0_i32, %c0_i32_0 : i32, i32
  }
  func.func @transform_4(%arg0: i32) -> (i32, i32) {
    %c0_i32 = arith.constant 0 : i32
    %c0_i32_0 = arith.constant 0 : i32
    %c0_i32_1 = arith.constant 0 : i32
    return %c0_i32, %c0_i32_0 : i32, i32
  }
  func.func @transform_5(%arg0: i32) -> (i32, i32) {
    %c0_i32 = arith.constant 0 : i32
    %c0_i32_0 = arith.constant 0 : i32
    return %arg0, %c0_i32 : i32, i32
  }
}

</mosaic_0001>

<llo_original>
// kernel: tpu_custom_call.1
$region0: #{tpu_custom_call.1}
  #allocation0 [shape = 'u32[]', space=smem, size = 0x4, offset = 0x4, fixed_abs, tag = 'smem constant byte address 0x4 - core index']
  #allocation1 [shape = 'u32[144,128]{1,0:T(1,128)}', space=vmem, size = 0x12000, scoped, tag = 'internal scratch']
  %s0 = inlined_call_operand.vmem [shape: f32[16,3], index: 0, kind: input, shape index: {}]
  %s1 = inlined_call_operand.vmem [shape: f32[2,2], index: 1, kind: input, shape index: {}]
  %s2 = inlined_call_operand.vmem [shape: f32[2,32], index: 2, kind: input, shape index: {}]
  %s3 = inlined_call_operand.vmem [shape: f32[2,32], index: 3, kind: input, shape index: {}]
  %s4 = inlined_call_operand.vmem [shape: bf16[16,33], index: 4, kind: input, shape index: {}]
  %s5 = inlined_call_operand.hbm [shape: f32[16,32], index: 5, kind: output, shape index: {}]
  %s6 = sld [smem:[#allocation0]]
  $region53: #{tpu_custom_call.1} parent=0
    _
  %s8 = ssub.s32 1, %s6
  %s9 = scalar_select 0, %s8, %s6
  $region1: #{tpu_custom_call.1} parent=0
    #allocation2 [shape = 'u8[8192]{0}', space=vmem, size = 0x2000, scoped, tag = 'output window, operand 0']
    #allocation3 [shape = 's32[2]{0}', space=sflag, size = 0x8, scoped, tag = 'scoped memory for tpu_custom_call.1']
    %10 = vsyncpa [#allocation3], 0
    %s11 = scalar_lea.sflag [#allocation3], 1
    %12 = vsyncpa %s11, 0
    loop: start=0, step=1, limit=4
    $region2: #{tpu_custom_call.1} parent=1 // loop_pre_header
      _
    $region3: #{tpu_custom_call.1} parent=1 // loop_header
      %s14 = sphi 0, %s18
      %p15 = scmp.ge.s32.totalorder %s14, 4
      %s24 = sphi 0, %s26
      %s27 = sphi 0, %s24
      %s28 = sphi 0, %s27
      %s44 = sphi 0, %s28
      %s48 = sphi 0, %s48
      %s50 = sphi 0, %s48
      %s51 = sphi 0, %s50
      %s65 = sphi 0, %s51
      %s69 = sphi 0, %s69
      %s71 = sphi 0, %s69
      %s72 = sphi 0, %s71
      %s86 = sphi 0, %s72
      %s90 = sphi 0, %s90
      %s92 = sphi 0, %s90
      %s93 = sphi 0, %s92
      %s107 = sphi 0, %s93
      %s111 = sphi 0, %s111
      %s113 = sphi 0, %s111
      %s114 = sphi 0, %s113
      %s128 = sphi 0, %s114
      %s134 = sphi 0, %s136
      %s137 = sphi 0, %s134
      %s138 = sphi 0, %s137
      %s154 = sphi 0, %s138
    $region4: #{tpu_custom_call.1} parent=1 // loop_header_branch
      %17 = sbr.rel (%p15) target = $region8
    $region5: #{tpu_custom_call.1} parent=1 // loop_body
      %s19 = ssub.s32 %s14, 1
      %s20 = ssub.s32 %s14, 2
      %s21 = sadd.s32 %s14, 1
      %s22 = ssub.s32 %s14, %s21
      %p23 = scmp.eq.s32.totalorder %s22, 0
      %s25 = sadd.s32 %s24, 1
      %s26 = scalar_select %p23, %s24, %s25
      %p29 = pneg %p23
      %p30 = scmp.eq.s32.totalorder %s14, 1
      %p31 = por %p29, %p30
      %p32 = scmp.ne.s32.totalorder %s24, %s27
      %p33 = scmp.eq.s32.totalorder %s14, 0
      %p34 = por %p32, %p33
      %p35 = scmp.ne.s32.totalorder %s24, %s27
      %p36 = scmp.eq.s32.totalorder %s19, 1
      %p37 = por %p35, %p36
      %p38 = scmp.ne.s32.totalorder %s27, %s28
      %p39 = scmp.eq.s32.totalorder %s19, 0
      %p40 = por %p38, %p39
      %p41 = scmp.ne.s32.totalorder %s27, %s28
      %p42 = scmp.eq.s32.totalorder %s20, 1
      %p43 = por %p41, %p42
      %p45 = scmp.ne.s32.totalorder %s28, %s44
      %p46 = scmp.eq.s32.totalorder %s20, 0
      %p47 = por %p45, %p46
      %s49 = sadd.s32 %s48, 1
      %p52 = scmp.eq.s32.totalorder %s14, 1
      %p53 = scmp.ne.s32.totalorder %s48, %s50
      %p54 = scmp.eq.s32.totalorder %s14, 0
      %p55 = por %p53, %p54
      %p56 = scmp.ne.s32.totalorder %s48, %s50
      %p57 = scmp.eq.s32.totalorder %s19, 1
      %p58 = por %p56, %p57
      %p59 = scmp.ne.s32.totalorder %s50, %s51
      %p60 = scmp.eq.s32.totalorder %s19, 0
      %p61 = por %p59, %p60
      %p62 = scmp.ne.s32.totalorder %s50, %s51
      %p63 = scmp.eq.s32.totalorder %s20, 1
      %p64 = por %p62, %p63
      %p66 = scmp.ne.s32.totalorder %s51, %s65
      %p67 = scmp.eq.s32.totalorder %s20, 0
      %p68 = por %p66, %p67
      %s70 = sadd.s32 %s69, 1
      %p73 = scmp.eq.s32.totalorder %s14, 1
      %p74 = scmp.ne.s32.totalorder %s69, %s71
      %p75 = scmp.eq.s32.totalorder %s14, 0
      %p76 = por %p74, %p75
      %p77 = scmp.ne.s32.totalorder %s69, %s71
      %p78 = scmp.eq.s32.totalorder %s19, 1
      %p79 = por %p77, %p78
      %p80 = scmp.ne.s32.totalorder %s71, %s72
      %p81 = scmp.eq.s32.totalorder %s19, 0
      %p82 = por %p80, %p81
      %p83 = scmp.ne.s32.totalorder %s71, %s72
      %p84 = scmp.eq.s32.totalorder %s20, 1
      %p85 = por %p83, %p84
      %p87 = scmp.ne.s32.totalorder %s72, %s86
      %p88 = scmp.eq.s32.totalorder %s20, 0
      %p89 = por %p87, %p88
      %s91 = sadd.s32 %s90, 1
      %p94 = scmp.eq.s32.totalorder %s14, 1
      %p95 = scmp.ne.s32.totalorder %s90, %s92
      %p96 = scmp.eq.s32.totalorder %s14, 0
      %p97 = por %p95, %p96
      %p98 = scmp.ne.s32.totalorder %s90, %s92
      %p99 = scmp.eq.s32.totalorder %s19, 1
      %p100 = por %p98, %p99
      %p101 = scmp.ne.s32.totalorder %s92, %s93
      %p102 = scmp.eq.s32.totalorder %s19, 0
      %p103 = por %p101, %p102
      %p104 = scmp.ne.s32.totalorder %s92, %s93
      %p105 = scmp.eq.s32.totalorder %s20, 1
      %p106 = por %p104, %p105
      %p108 = scmp.ne.s32.totalorder %s93, %s107
      %p109 = scmp.eq.s32.totalorder %s20, 0
      %p110 = por %p108, %p109
      %s112 = sadd.s32 %s111, 1
      %p115 = scmp.eq.s32.totalorder %s14, 1
      %p116 = scmp.ne.s32.totalorder %s111, %s113
      %p117 = scmp.eq.s32.totalorder %s14, 0
      %p118 = por %p116, %p117
      %p119 = scmp.ne.s32.totalorder %s111, %s113
      %p120 = scmp.eq.s32.totalorder %s19, 1
      %p121 = por %p119, %p120
      %p122 = scmp.ne.s32.totalorder %s113, %s114
      %p123 = scmp.eq.s32.totalorder %s19, 0
      %p124 = por %p122, %p123
      %p125 = scmp.ne.s32.totalorder %s113, %s114
      %p126 = scmp.eq.s32.totalorder %s20, 1
      %p127 = por %p125, %p126
      %p129 = scmp.ne.s32.totalorder %s114, %s128
      %p130 = scmp.eq.s32.totalorder %s20, 0
      %p131 = por %p129, %p130
      %s132 = ssub.s32 %s14, %s21
      %p133 = scmp.eq.s32.totalorder %s132, 0
      %s135 = sadd.s32 %s134, 1
      %s136 = scalar_select %p133, %s134, %s135
      %p139 = pneg %p133
      %p140 = scmp.eq.s32.totalorder %s14, 1
      %p141 = por %p139, %p140
      %p142 = scmp.ne.s32.totalorder %s134, %s137
      %p143 = scmp.eq.s32.totalorder %s14, 0
      %p144 = por %p142, %p143
      %p145 = scmp.ne.s32.totalorder %s134, %s137
      %p146 = scmp.eq.s32.totalorder %s19, 1
      %p147 = por %p145, %p146
      %p148 = scmp.ne.s32.totalorder %s137, %s138
      %p149 = scmp.eq.s32.totalorder %s19, 0
      %p150 = por %p148, %p149
      %p151 = scmp.ne.s32.totalorder %s137, %s138
      %p152 = scmp.eq.s32.totalorder %s20, 1
      %p153 = por %p151, %p152
      %p155 = scmp.ne.s32.totalorder %s138, %s154
      %p156 = scmp.eq.s32.totalorder %s20, 0
      %p157 = por %p155, %p156
      %p158 = scmp.le.s32.totalorder 1, %s14
      %p159 = scmp.lt.s32.totalorder %s14, 3
      %p160 = pnand %p158, %p159
      %p161 = pneg %p160
      // Predicated region
      $region9: #{tpu_custom_call.1} parent=5 // pred_check
        _
      $region10: #{tpu_custom_call.1} parent=5 // pred_check_branch
        %163 = sbr.rel (%p160) target = $region12
      $region11: #{tpu_custom_call.1} parent=5 // pred_region
        %s164 = ssub.s32 %s14, 1
        // Predicated region
        $region13: #{tpu_custom_call.1} parent=11 // pred_check
          %p165 = pneg %p61
        $region14: #{tpu_custom_call.1} parent=11 // pred_check_branch
          %167 = sbr.rel (%p165) target = $region16
        $region15: #{tpu_custom_call.1} parent=11 // pred_region
          _
        $region16: #{tpu_custom_call.1} parent=11 // pred_fallthru
          _
        // Predicated region
        $region17: #{tpu_custom_call.1} parent=11 // pred_check
          %p168 = pneg %p82
        $region18: #{tpu_custom_call.1} parent=11 // pred_check_branch
          %170 = sbr.rel (%p168) target = $region20
        $region19: #{tpu_custom_call.1} parent=11 // pred_region
          _
        $region20: #{tpu_custom_call.1} parent=11 // pred_fallthru
          _
        // Predicated region
        $region21: #{tpu_custom_call.1} parent=11 // pred_check
          %p171 = pneg %p103
        $region22: #{tpu_custom_call.1} parent=11 // pred_check_branch
          %173 = sbr.rel (%p171) target = $region24
        $region23: #{tpu_custom_call.1} parent=11 // pred_region
          _
        $region24: #{tpu_custom_call.1} parent=11 // pred_fallthru
          _
        // Predicated region
        $region25: #{tpu_custom_call.1} parent=11 // pred_check
          %p174 = pneg %p124
        $region26: #{tpu_custom_call.1} parent=11 // pred_check_branch
          %176 = sbr.rel (%p174) target = $region28
        $region27: #{tpu_custom_call.1} parent=11 // pred_region
          _
        $region28: #{tpu_custom_call.1} parent=11 // pred_fallthru
          _
      $region12: #{tpu_custom_call.1} parent=5 // pred_fallthru
        _
      %p177 = scmp.lt.s32.totalorder %s14, 2
      // Predicated region
      $region29: #{tpu_custom_call.1} parent=5 // pred_check
        %p178 = pneg %p177
      $region30: #{tpu_custom_call.1} parent=5 // pred_check_branch
        %180 = sbr.rel (%p178) target = $region32
      $region31: #{tpu_custom_call.1} parent=5 // pred_region
        // Predicated region
        $region33: #{tpu_custom_call.1} parent=31 // pred_check
          %p181 = pneg %p34
        $region34: #{tpu_custom_call.1} parent=31 // pred_check_branch
          %183 = sbr.rel (%p181) target = $region36
        $region35: #{tpu_custom_call.1} parent=31 // pred_region
          %p184 = scmp.lt.s32.totalorder %s14, 1
          %s185 = scalar_select %p184, %s14, 1
          %s186 = smul.addr %s185, 8
          %s187 = scalar_lea.vmem %s0, %s186
        $region36: #{tpu_custom_call.1} parent=31 // pred_fallthru
          _
      $region32: #{tpu_custom_call.1} parent=5 // pred_fallthru
        _
      %p188 = scmp.le.s32.totalorder 1, %s14
      %p189 = scmp.lt.s32.totalorder %s14, 3
      %p190 = pnand %p188, %p189
      %p191 = pneg %p190
      // Predicated region
      $region37: #{tpu_custom_call.1} parent=5 // pred_check
        _
      $region38: #{tpu_custom_call.1} parent=5 // pred_check_branch
        %193 = sbr.rel (%p190) target = $region40
      $region39: #{tpu_custom_call.1} parent=5 // pred_region
        %s194 = ssub.s32 %s14, 1
        %p195 = scmp.lt.s32.totalorder %s19, 1
        %s196 = scalar_select %p195, %s19, 1
        %s197 = smul.addr %s196, 8
        %s198 = scalar_lea.vmem %s0, %s197
        %p199 = pneg %p40
        %p200 = pneg %p37
        %p201 = pneg %p61
        %p202 = pneg %p58
        %p203 = pneg %p82
        %p204 = pneg %p79
        %p205 = pneg %p103
        %p206 = pneg %p100
        %p207 = pneg %p124
        %p208 = pneg %p121
        %p209 = pneg %p150
        %p210 = pneg %p147
        %s211 = sand.u32 %s137, 1
        %s212 = scalar_lea.sflag [#allocation3], %s211
        %s213 = sand.u32 %s137, 1
        %s214 = smul.addr %s213, 8
        %s215 = scalar_lea.vmem [#allocation2], %s214
        %p216 = scmp.lt.s32.totalorder %s19, 1
        %s217 = scalar_select %p216, %s19, 1
        %s218 = smul.addr %s217, 8
        %s219 = scalar_lea.vmem %s0, %s218
        %v221 = vld [vmem:[%s219] sm:$0xff]
        %vm223 = vcmp.ne.f32.partialorder %v221, %v221
        %vm224 = vmxor %vm223, 1
        %v225 = vsel %vm224, %v221, 0.0
        %v226 = vld [vmem:[%s1] sm:$0x1]
        %v227 = vld [vmem:[%s1 + $0x1] sm:$0x1]
        %v228 = vlaneseq
        %v229 = vshrl.u32 %v228, 7
        %v230 = vsub.s32 0, %v229
        %v231 = vrot.slane %v226, %v230
        %v232 = vmul.f32 %v225, %v231
        %v233 = vlaneseq
        %v234 = vshrl.u32 %v233, 7
        %v235 = vsub.s32 0, %v234
        %v236 = vrot.slane %v227, %v235
        %v237 = vadd.f32 %v232, %v236
        %v238 = vsel %vm224, %v237, -1e+30
        %v239 = vlaneseq
        %v240 = vand.u32 %v239, 127
        %241 = vset.pattern.permute.xlu0 2
        %242 = vperm.xlu0 %241, %v221
        %v243 = vpop.permute.xlu0 %242
        %vm244 = vcmp.eq.s32.totalorder %v243, %v240
        %v245 = vsel %vm244, 1, 0
        %v246 = vcvt.s32.f32 %v245
        %v247 = vpack.c.bf16 %v246, %v246
        %v248 = vld [vmem:[%s4] sm:$0xf]
        %v249 = vld [vmem:[%s4 + $0x4] sm:$0xf]
        %v252 = vunpack.c.l.b16 %v248
        %v253 = vunpack.c.l.b16 %v249
        %v254 = vpack.c.b16 %v253, %v252
        %vm256 = vcmask 130048
        %v258 = vsel %vm256, %v247, 0
        %260 = vmatprep.subr.bf16.mxu0 0
        %261 = vmatpush1.bf16.msra.mxu0 %v254
        %262 = vmatprep.subr.bf16.mxu0 0
        %263 = vmatpush1.bf16.msra.mxu0 0
        %264 = vmatprep.subr.bf16.mxu0 0
        %265 = vmatpush1.bf16.msra.mxu0 0
        %266 = vmatprep.subr.bf16.mxu0 0
        %267 = vmatpush1.bf16.msra.mxu0 0
        %268 = vmatprep.subr.bf16.mxu0 0
        %269 = vmatpush1.bf16.msra.mxu0 0
        %270 = vmatprep.subr.bf16.mxu0 0
        %271 = vmatpush1.bf16.msra.mxu0 0
        %272 = vmatprep.subr.bf16.mxu0 0
        %273 = vmatpush1.bf16.msra.mxu0 0
        %274 = vmatprep.subr.bf16.mxu0 0
        %275 = vmatpush1.bf16.msra.mxu0 0
        %276 = vmatprep.subr.bf16.mxu0 0
        %277 = vmatpush1.bf16.msra.mxu0 0
        %278 = vmatprep.subr.bf16.mxu0 0
        %279 = vmatpush1.bf16.msra.mxu0 0
        %280 = vmatprep.subr.bf16.mxu0 0
        %281 = vmatpush1.bf16.msra.mxu0 0
        %282 = vmatprep.subr.bf16.mxu0 0
        %283 = vmatpush1.bf16.msra.mxu0 0
        %284 = vmatprep.subr.bf16.mxu0 0
        %285 = vmatpush1.bf16.msra.mxu0 0
        %286 = vmatprep.subr.bf16.mxu0 0
        %287 = vmatpush1.bf16.msra.mxu0 0
        %288 = vmatprep.subr.bf16.mxu0 0
        %289 = vmatpush1.bf16.msra.mxu0 0
        %290 = vmatprep.subr.bf16.mxu0 0
        %291 = vmatpush1.bf16.msra.mxu0 0
        %292 = vmatprep.mubr.bf16.mxu0 0
        %293 = vmatmul.mubr.bf16.gmra.mrb[0].mxu0 %v258
        %v294 = vpop.f32.mrb[0].mxu0
        %v295 = vadd.f32 0.0, %v294
        %v296 = vpop.f32.mrb[0].mxu0
        %v297 = vpop.f32.mrb[0].mxu0
        %v298 = vpop.f32.mrb[0].mxu0
        %299 = vdwg.mxu0
        %vm300 = vcmask 15360
        %v301 = vsel %vm300, %v238, -inf
        %302 = vmax.xlane.f32.xlu0 %v301
        %v303 = vpop.xlane.xlu0 %302
        %v304 = vmax.f32 %v303, %v295
        %306 = vset.pattern.permute.xlu0 32
        %307 = vperm.xlu0 %306, %v304
        %v308 = vpop.permute.xlu0 %307
        %v310 = vsub.f32 %v238, %v308
        %v311 = vmul.f32 %v310, 1.442695
        %v312 = vpow.pop %v311
        %v313 = vsub.f32 %v295, %v304
        %v314 = vmul.f32 %v313, 1.442695
        %v315 = vpow.pop %v314
        %v316 = vsel %vm300, %v312, 0.0
        %317 = vadd.xlane.f32.xlu0 %v316
        %v318 = vpop.xlane.xlu0 %317
        %v319 = vadd.f32 %v318, %v315
        %v320 = vrcp.pop %v319
        %322 = vset.pattern.permute.xlu0 32
        %323 = vperm.xlu0 %322, %v320
        %v324 = vpop.permute.xlu0 %323
        %v326 = vmul.f32 %v312, %v324
        %v327 = vmul.f32 %v315, %v320
        %v328 = vmul.f32 %v326, %v225
        %v329 = vld [vmem:[%s2] sm:$0x3]
        %v330 = vld [vmem:[%s3] sm:$0x3]
        %v332 = vsel %vm300, %v326, 0
        %vm334 = vcmask 1041408
        %v336 = vsel %vm334, %v330, 0
        %338 = vmatprep.subr.mxu0 0.0
        %339 = vmatpush1.msra.mxu0 %v336
        %340 = vmatprep.subr.mxu0 0.0
        %341 = vmatpush1.msra.mxu0 0.0
        %342 = vmatprep.subr.mxu0 0.0
        %343 = vmatpush1.msra.mxu0 0.0
        %344 = vmatprep.subr.mxu0 0.0
        %345 = vmatpush1.msra.mxu0 0.0
        %346 = vmatprep.subr.mxu0 0.0
        %347 = vmatpush1.msra.mxu0 0.0
        %348 = vmatprep.subr.mxu0 0.0
        %349 = vmatpush1.msra.mxu0 0.0
        %350 = vmatprep.subr.mxu0 0.0
        %351 = vmatpush1.msra.mxu0 0.0
        %352 = vmatprep.subr.mxu0 0.0
        %353 = vmatpush1.msra.mxu0 0.0
        %354 = vmatprep.subr.mxu0 0.0
        %355 = vmatpush1.msra.mxu0 0.0
        %356 = vmatprep.subr.mxu0 0.0
        %357 = vmatpush1.msra.mxu0 0.0
        %358 = vmatprep.subr.mxu0 0.0
        %359 = vmatpush1.msra.mxu0 0.0
        %360 = vmatprep.subr.mxu0 0.0
        %361 = vmatpush1.msra.mxu0 0.0
        %362 = vmatprep.subr.mxu0 0.0
        %363 = vmatpush1.msra.mxu0 0.0
        %364 = vmatprep.subr.mxu0 0.0
        %365 = vmatpush1.msra.mxu0 0.0
        %366 = vmatprep.subr.mxu0 0.0
        %367 = vmatpush1.msra.mxu0 0.0
        %368 = vmatprep.subr.mxu0 0.0
        %369 = vmatpush1.msra.mxu0 0.0
        %370 = vmatprep.subr.mxu0 0.0
        %371 = vmatpush1.msra.mxu0 0.0
        %372 = vmatprep.subr.mxu0 0.0
        %373 = vmatpush1.msra.mxu0 0.0
        %374 = vmatprep.subr.mxu0 0.0
        %375 = vmatpush1.msra.mxu0 0.0
        %376 = vmatprep.subr.mxu0 0.0
        %377 = vmatpush1.msra.mxu0 0.0
        %378 = vmatprep.subr.mxu0 0.0
        %379 = vmatpush1.msra.mxu0 0.0
        %380 = vmatprep.subr.mxu0 0.0
        %381 = vmatpush1.msra.mxu0 0.0
        %382 = vmatprep.subr.mxu0 0.0
        %383 = vmatpush1.msra.mxu0 0.0
        %384 = vmatprep.subr.mxu0 0.0
        %385 = vmatpush1.msra.mxu0 0.0
        %386 = vmatprep.subr.mxu0 0.0
        %387 = vmatpush1.msra.mxu0 0.0
        %388 = vmatprep.subr.mxu0 0.0
        %389 = vmatpush1.msra.mxu0 0.0
        %390 = vmatprep.subr.mxu0 0.0
        %391 = vmatpush1.msra.mxu0 0.0
        %392 = vmatprep.subr.mxu0 0.0
        %393 = vmatpush1.msra.mxu0 0.0
        %394 = vmatprep.subr.mxu0 0.0
        %395 = vmatpush1.msra.mxu0 0.0
        %396 = vmatprep.subr.mxu0 0.0
        %397 = vmatpush1.msra.mxu0 0.0
        %398 = vmatprep.subr.mxu0 0.0
        %399 = vmatpush1.msra.mxu0 0.0
        %400 = vmatprep.subr.mxu0 0.0
        %401 = vmatpush1.msra.mxu0 0.0
        %402 = vmatprep.mubr.f32.mxu0 0.0
        %403 = vmatmul.mubr.f32.gmra.mrb[0].mxu0 %v332
        %v404 = vpop.f32.mrb[0].mxu0
        %v405 = vadd.f32 0.0, %v404
        %v406 = vpop.f32.mrb[0].mxu0
        %407 = vdwg.mxu0
        %v409 = vsel %vm300, %v328, 0
        %v412 = vsel %vm334, %v329, 0
        %414 = vmatprep.subr.mxu0 0.0
        %415 = vmatpush1.msra.mxu0 %v412
        %416 = vmatprep.subr.mxu0 0.0
        %417 = vmatpush1.msra.mxu0 0.0
        %418 = vmatprep.subr.mxu0 0.0
        %419 = vmatpush1.msra.mxu0 0.0
        %420 = vmatprep.subr.mxu0 0.0
        %421 = vmatpush1.msra.mxu0 0.0
        %422 = vmatprep.subr.mxu0 0.0
        %423 = vmatpush1.msra.mxu0 0.0
        %424 = vmatprep.subr.mxu0 0.0
        %425 = vmatpush1.msra.mxu0 0.0
        %426 = vmatprep.subr.mxu0 0.0
        %427 = vmatpush1.msra.mxu0 0.0
        %428 = vmatprep.subr.mxu0 0.0
        %429 = vmatpush1.msra.mxu0 0.0
        %430 = vmatprep.subr.mxu0 0.0
        %431 = vmatpush1.msra.mxu0 0.0
        %432 = vmatprep.subr.mxu0 0.0
        %433 = vmatpush1.msra.mxu0 0.0
        %434 = vmatprep.subr.mxu0 0.0
        %435 = vmatpush1.msra.mxu0 0.0
        %436 = vmatprep.subr.mxu0 0.0
        %437 = vmatpush1.msra.mxu0 0.0
        %438 = vmatprep.subr.mxu0 0.0
        %439 = vmatpush1.msra.mxu0 0.0
        %440 = vmatprep.subr.mxu0 0.0
        %441 = vmatpush1.msra.mxu0 0.0
        %442 = vmatprep.subr.mxu0 0.0
        %443 = vmatpush1.msra.mxu0 0.0
        %444 = vmatprep.subr.mxu0 0.0
        %445 = vmatpush1.msra.mxu0 0.0
        %446 = vmatprep.subr.mxu0 0.0
        %447 = vmatpush1.msra.mxu0 0.0
        %448 = vmatprep.subr.mxu0 0.0
        %449 = vmatpush1.msra.mxu0 0.0
        %450 = vmatprep.subr.mxu0 0.0
        %451 = vmatpush1.msra.mxu0 0.0
        %452 = vmatprep.subr.mxu0 0.0
        %453 = vmatpush1.msra.mxu0 0.0
        %454 = vmatprep.subr.mxu0 0.0
        %455 = vmatpush1.msra.mxu0 0.0
        %456 = vmatprep.subr.mxu0 0.0
        %457 = vmatpush1.msra.mxu0 0.0
        %458 = vmatprep.subr.mxu0 0.0
        %459 = vmatpush1.msra.mxu0 0.0
        %460 = vmatprep.subr.mxu0 0.0
        %461 = vmatpush1.msra.mxu0 0.0
        %462 = vmatprep.subr.mxu0 0.0
        %463 = vmatpush1.msra.mxu0 0.0
        %464 = vmatprep.subr.mxu0 0.0
        %465 = vmatpush1.msra.mxu0 0.0
        %466 = vmatprep.subr.mxu0 0.0
        %467 = vmatpush1.msra.mxu0 0.0
        %468 = vmatprep.subr.mxu0 0.0
        %469 = vmatpush1.msra.mxu0 0.0
        %470 = vmatprep.subr.mxu0 0.0
        %471 = vmatpush1.msra.mxu0 0.0
        %472 = vmatprep.subr.mxu0 0.0
        %473 = vmatpush1.msra.mxu0 0.0
        %474 = vmatprep.subr.mxu0 0.0
        %475 = vmatpush1.msra.mxu0 0.0
        %476 = vmatprep.subr.mxu0 0.0
        %477 = vmatpush1.msra.mxu0 0.0
        %478 = vmatprep.mubr.f32.mxu0 0.0
        %479 = vmatmul.mubr.f32.gmra.mrb[0].mxu0 %v409
        %v480 = vpop.f32.mrb[0].mxu0
        %v481 = vadd.f32 %v405, %v480
        %v482 = vpop.f32.mrb[0].mxu0
        %483 = vdwg.mxu0
        %485 = vset.pattern.permute.xlu0 32
        %486 = vperm.xlu0 %485, %v327
        %v487 = vpop.permute.xlu0 %486
        %v489 = vmul.f32 %v487, %v295
        %v490 = vadd.f32 %v481, %v489
        %vm491 = vcmask 261120
        %492 = vst.msk [vmem:[%s215] sm:$0xff] %vm491, %v490
        %s493 = sand.u32 %s137, 1
        %s494 = scalar_lea.sflag [#allocation3], %s493
        %s495 = sand.u32 %s137, 1
        %s496 = smul.addr %s495, 8
        %s497 = scalar_lea.vmem [#allocation2], %s496
        // Predicated region
        $region41: #{tpu_custom_call.1} parent=39 // pred_check
          %p498 = pneg %p147
        $region42: #{tpu_custom_call.1} parent=39 // pred_check_branch
          %500 = sbr.rel (%p498) target = $region44
        $region43: #{tpu_custom_call.1} parent=39 // pred_region
          %s502 = ssub.s32 128, 128
          %503 = vsyncadd %s494, %s502
          %s504 = smul.addr %s19, 128
          %s505 = scalar_lea.hbm %s5, %s504
          %s507 = sshll.u32 %s497, 4
          %s508 = int_to_ptr.vmem [resolvable:$true] %s507
          %510 = dma.vmem_to_hbm [thread:$0]  %s508, 128, %s505, %s494
        $region44: #{tpu_custom_call.1} parent=39 // pred_fallthru
          _
      $region40: #{tpu_custom_call.1} parent=5 // pred_fallthru
        _
      %p511 = scmp.le.s32.totalorder 2, %s14
      // Predicated region
      $region45: #{tpu_custom_call.1} parent=5 // pred_check
        %p512 = pneg %p511
      $region46: #{tpu_custom_call.1} parent=5 // pred_check_branch
        %514 = sbr.rel (%p512) target = $region48
      $region47: #{tpu_custom_call.1} parent=5 // pred_region
        %s515 = ssub.s32 %s14, 2
        // Predicated region
        $region49: #{tpu_custom_call.1} parent=47 // pred_check
          %p516 = pneg %p153
        $region50: #{tpu_custom_call.1} parent=47 // pred_check_branch
          %518 = sbr.rel (%p516) target = $region52
        $region51: #{tpu_custom_call.1} parent=47 // pred_region
          %s519 = sand.u32 %s138, 1
          %s520 = scalar_lea.sflag [#allocation3], %s519
          %s521 = sand.u32 %s138, 1
          %s522 = smul.addr %s521, 8
          %s523 = scalar_lea.vmem [#allocation2], %s522
          %524 = dma.done %s520, 128
        $region52: #{tpu_custom_call.1} parent=47 // pred_fallthru
          _
      $region48: #{tpu_custom_call.1} parent=5 // pred_fallthru
        _
    $region6: #{tpu_custom_call.1} parent=1 // loop_footer
      %s18 = sadd.s32 1, %s14
    $region7: #{tpu_custom_call.1} parent=1 // loop_footer_branch
      %13 = sbr.rel target = $region3
    $region8: #{tpu_custom_call.1} parent=1 // loop_exit
      _
    %525 = vsyncpa [#allocation3], 1
    %s526 = scalar_lea.sflag [#allocation3], 1
    %527 = vsyncpa %s526, 1

</llo_original>
